<compile_context>
chip_gen: v7x
topology: tpu7x:2x2x1
jax: 0.10.0
libtpu: 0.0.40
codegen_flags: <defaults>
</compile_context>

<pallas_src>
import functools

import jax
import jax.numpy as jnp
import numpy as np
from jax.experimental import pallas as pl
from jax.experimental.pallas import tpu as pltpu

NUM_CLASSES = 2
NUM_BIASES = 2

_LANE = 128
_SUBLANE = 8
# Lanes per core per grid step: 8 sublanes x 16384 lanes = 131072 batch rows
# per core-step.  Double-buffered footprint ~7 MiB (f32) -> safe on v5e's
# 16 MiB default scoped VMEM and far under v7x's 64 MiB physical VMEM.
_MAX_TILE_LANES = 16384


def _round_up(x, m):
    return ((x + m - 1) // m) * m


def _diloss_kernel(x_ref, tgt_ref, *rest, num_classes, num_biases, true_b,
                   bp16, tile_l, has_gc, mask_mode):
    if has_gc:
        gc_ref, out_ref, acc_ref = rest
    else:
        out_ref, acc_ref = rest

    c = pl.program_id(0)            # sublane-half / core (parallel axis)
    i = pl.program_id(1)            # lane block (arbitrary / accumulation axis)
    n_i = pl.num_programs(1)

    @pl.when(i == 0)
    def _init():
        acc_ref[...] = jnp.zeros_like(acc_ref)

    C, G = num_classes, num_biases
    tgt = tgt_ref[...]                                            # (8, TL) int32

    # Per-class rows read directly from the ref along the (cheap) leading axis.
    rows = [x_ref[r].astype(jnp.float32) for r in range(G * C)]   # (8, TL) each

    nll = None
    for g in range(G):
        grp = rows[g * C:(g + 1) * C]
        if C == 2:
            a, b = grp
            # logaddexp form: 1 exp + 1 log per group (vs 2 exp + 1 log).
            logz = jnp.maximum(a, b) + jnp.log(1.0 + jnp.exp(-jnp.abs(a - b)))
            picked = jnp.where(tgt == g * C + 1, b, a)
        else:
            m = grp[0]
            for r in grp[1:]:
                m = jnp.maximum(m, r)
            s = jnp.exp(grp[0] - m)
            for r in grp[1:]:
                s = s + jnp.exp(r - m)
            logz = m + jnp.log(s)
            picked = grp[0]
            for k in range(1, C):
                picked = jnp.where(tgt == g * C + k, grp[k], picked)
        nll_g = logz - picked                       # -log_softmax at target class
        # Groups processed in increasing order: last group with start <= tgt wins.
        nll = nll_g if nll is None else jnp.where(tgt >= g * C, nll_g, nll)

    if has_gc:
        nll = nll * gc_ref[...].astype(jnp.float32)

    def _masked(v):
        # batch index of element (sublane s, lane l) = (c*8 + s)*bp16 + i*TL + l
        srow = jax.lax.broadcasted_iota(jnp.int32, v.shape, 0)
        lcol = i * tile_l + jax.lax.broadcasted_iota(jnp.int32, v.shape, 1)
        b_idx = (c * _SUBLANE + srow) * bp16 + lcol
        valid = (lcol < bp16) & (b_idx < true_b)
        return jnp.where(valid, v, 0.0)

    if mask_mode == "always":
        acc_ref[...] += _masked(nll)
    elif mask_mode == "last":
        @pl.when(i == n_i - 1)
        def _acc_masked():
            acc_ref[...] += _masked(nll)

        @pl.when(i != n_i - 1)
        def _acc_plain():
            acc_ref[...] += nll
    else:  # "none": batch is tile-aligned, every element is valid.
        acc_ref[...] += nll

    @pl.when(i == n_i - 1)
    def _finalize():
        total = jnp.sum(acc_ref[...])
        out_ref[...] = jnp.full(out_ref.shape, total, jnp.float32)


def diloss(logits, labels, biases, gc=None, *,
           num_classes=NUM_CLASSES, num_biases=NUM_BIASES,
           max_tile_lanes=_MAX_TILE_LANES):
    """Pallas TPU implementation of DILoss.forward (returns the mean loss)."""
    B, D = logits.shape
    assert D == num_classes * num_biases
    assert B >= 1

    # Pad batch to a multiple of 16 so it folds into (16 sublanes, bp16 lanes).
    bp = _round_up(B, 2 * _SUBLANE)
    bp16 = bp // (2 * _SUBLANE)

    # Lane tile: either the whole lane axis or a multiple of 128.
    max_tl = max(_LANE, _round_up(max_tile_lanes, _LANE))
    tl = bp16 if bp16 <= max_tl else max_tl
    grid_i = (bp16 + tl - 1) // tl

    # Where can invalid (padded / out-of-bounds) elements appear?
    if bp == B and bp16 % tl == 0:
        mask_mode = "none"
    else:
        last_start = (grid_i - 1) * tl
        tail_only = all((b % bp16) >= last_start for b in range(B, bp))
        mask_mode = "last" if tail_only else "always"

    # TODO(synk): this transpose+pad+reshape is one extra relayout pass over
    # the logits; emitting logits as (D, B) upstream (or pulling the transpose
    # into the pallas_call via allow_input_fusion) would remove it.
    x_t = jnp.transpose(logits)                                   # (D, B), native dtype
    tgt = (biases.astype(jnp.int32) * num_classes
           + labels.astype(jnp.int32))                            # (B,)
    pad = bp - B
    if pad:
        x_t = jnp.pad(x_t, ((0, 0), (0, pad)))
        tgt = jnp.pad(tgt, (0, pad))
    xr = x_t.reshape(D, 2 * _SUBLANE, bp16)
    tgt_r = tgt.reshape(2 * _SUBLANE, bp16)

    has_gc = gc is not None
    args = [xr, tgt_r]
    in_specs = [
        pl.BlockSpec((D, _SUBLANE, tl), lambda c, i: (0, c, i)),
        pl.BlockSpec((_SUBLANE, tl), lambda c, i: (c, i)),
    ]
    gc_item = 0
    if has_gc:
        gcv = gc                                                  # native dtype, in-kernel upcast
        if pad:
            gcv = jnp.pad(gcv, (0, pad))
        args.append(gcv.reshape(2 * _SUBLANE, bp16))
        in_specs.append(pl.BlockSpec((_SUBLANE, tl), lambda c, i: (c, i)))
        gc_item = jnp.dtype(gc.dtype).itemsize

    kernel = functools.partial(
        _diloss_kernel, num_classes=num_classes, num_biases=num_biases,
        true_b=B, bp16=bp16, tile_l=tl, has_gc=has_gc, mask_mode=mask_mode)

    itemsize = jnp.dtype(logits.dtype).itemsize
    # Double-buffered inputs + f32 accumulator + output block, with headroom.
    step_bytes = _SUBLANE * tl * (D * itemsize + 4 + gc_item)
    vmem_need = 2 * step_bytes + _SUBLANE * tl * 4 + 2 * _SUBLANE * _LANE * 4
    vmem_limit = int(min(max(2 * vmem_need, 32 << 20), 64 << 20))

    n_transc = 2 if num_classes == 2 else num_classes + 1
    cost = pl.CostEstimate(
        flops=B * num_biases * 8,
        transcendentals=B * num_biases * n_transc,
        bytes_accessed=(bp * D * itemsize + bp * (4 + gc_item)
                        + 2 * _SUBLANE * _LANE * 4))

    out = pl.pallas_call(
        kernel,
        out_shape=jax.ShapeDtypeStruct((2, _SUBLANE, _LANE), jnp.float32),
        grid=(2, grid_i),
        in_specs=in_specs,
        out_specs=pl.BlockSpec((1, _SUBLANE, _LANE), lambda c, i: (c, 0, 0)),
        scratch_shapes=[pltpu.VMEM((_SUBLANE, tl), jnp.float32)],
        compiler_params=pltpu.CompilerParams(
            dimension_semantics=("parallel", "arbitrary"),
            vmem_limit_bytes=vmem_limit),
        cost_estimate=cost,
    )(*args)

    # Sum the two per-core partial sums; divide by the true batch size once.
    return (out[0, 0, 0] + out[1, 0, 0]) / jnp.float32(B)


def _diloss_ref(logits, labels, biases, gc=None,
                num_classes=NUM_CLASSES, num_biases=NUM_BIASES):
    x = logits.astype(jnp.float32)
    lps = [jax.nn.log_softmax(
        x[:, i * num_classes:(i + 1) * num_classes], axis=1)
        for i in range(num_biases)]
    output = jnp.concatenate(lps, axis=1)
    target = biases.astype(jnp.int32) * num_classes + labels.astype(jnp.int32)
    per_row = -jnp.take_along_axis(output, target[:, None], axis=1)[:, 0]
    if gc is not None:
        per_row = per_row * gc.astype(jnp.float32)
    return jnp.mean(per_row)


if __name__ == "__main__":
    key = jax.random.PRNGKey(0)
    D = NUM_CLASSES * NUM_BIASES

    def make(bsz, k):
        k1, k2, k3, k4 = jax.random.split(k, 4)
        logits = jax.random.normal(k1, (bsz, D), jnp.float32)
        labels = jax.random.randint(k2, (bsz,), 0, NUM_CLASSES, jnp.int32)
        biases = jax.random.randint(k3, (bsz,), 0, NUM_BIASES, jnp.int32)
        gc = jax.random.uniform(k4, (bsz,), jnp.float32)
        return logits, labels, biases, gc

    keys = jax.random.split(key, 3)

    # Case 1: tiny batch, gc=None and gc-weighted paths.
    logits, labels, biases, gc = make(8, keys[0])
    out = jax.block_until_ready(diloss(logits, labels, biases, None))
    np.testing.assert_allclose(
        np.asarray(out), np.asarray(_diloss_ref(logits, labels, biases, None)),
        rtol=1e-5, atol=1e-5)
    out = jax.block_until_ready(diloss(logits, labels, biases, gc))
    np.testing.assert_allclose(
        np.asarray(out), np.asarray(_diloss_ref(logits, labels, biases, gc)),
        rtol=1e-5, atol=1e-5)

    # Case 2: bf16 logits over the wire (in-kernel f32 upcast), gc=None.
    lb = logits.astype(jnp.bfloat16)
    out = jax.block_until_ready(diloss(lb, labels, biases, None))
    np.testing.assert_allclose(
        np.asarray(out), np.asarray(_diloss_ref(lb, labels, biases, None)),
        rtol=1e-5, atol=1e-5)

    # Case 3: multi-step accumulation grid + partial last lane block, padded
    #         rows confined to the last step (mask_mode == "last").
    logits, labels, biases, gc = make(2500, keys[1])
    out = jax.block_until_ready(
        diloss(logits, labels, biases, gc, max_tile_lanes=128))
    np.testing.assert_allclose(
        np.asarray(out), np.asarray(_diloss_ref(logits, labels, biases, gc)),
        rtol=1e-5, atol=1e-5)

    # Case 4: padded rows landing outside the last lane block
    #         (mask_mode == "always" safety path).
    logits, labels, biases, gc = make(2050, keys[2])
    out = jax.block_until_ready(
        diloss(logits, labels, biases, gc, max_tile_lanes=128))
    np.testing.assert_allclose(
        np.asarray(out), np.asarray(_diloss_ref(logits, labels, biases, gc)),
        rtol=1e-5, atol=1e-5)

    print("KERNEL_OK")
</pallas_src>

<mosaic_0001>
module attributes {stable_mosaic.version = 11 : i64} {
  func.func @_diloss_kernel(%arg0: i32, %arg1: i32, %arg2: memref<4x8x1xf32, #tpu.memory_space<vmem>>, %arg3: memref<8x1xi32, #tpu.memory_space<vmem>>, %arg4: memref<1x8x128xf32, #tpu.memory_space<vmem>>, %arg5: memref<8x1xf32, #tpu.memory_space<vmem>>) attributes {dimension_semantics = [#tpu.dimension_semantics<parallel>, #tpu.dimension_semantics<arbitrary>], iteration_bounds = array<i64: 2, 1>, scalar_prefetch = 0 : i64, scratch_operands = 1 : i64, tpu.core_type = #tpu.core_type<tc>, window_params = [{transform_indices = @transform_0, window_bounds = array<i64: 4, 8, 1>}, {transform_indices = @transform_1, window_bounds = array<i64: 8, 1>}, {transform_indices = @transform_2, window_bounds = array<i64: 1, 8, 128>}]} {
    %c0_i32 = arith.constant 0 : i32
    %0 = arith.cmpi eq, %arg1, %c0_i32 : i32
    %1 = arith.extui %0 : i1 to i32
    %c0_i32_0 = arith.constant 0 : i32
    %2 = arith.cmpi ne, %1, %c0_i32_0 : i32
    scf.if %2 {
      %cst_20 = arith.constant 0.000000e+00 : f32
      %52 = vector.broadcast %cst_20 : f32 to vector<8x1xf32>
      %c0_21 = arith.constant 0 : index
      %c0_22 = arith.constant 0 : index
      %53 = vector.load %arg5[%c0_21, %c0_22] : memref<8x1xf32, #tpu.memory_space<vmem>>, vector<8x1xf32>
      tpu.vector_store %arg5[%c0_21, %c0_22], %52 {strides = array<i32>} : memref<8x1xf32, #tpu.memory_space<vmem>>, vector<8x1xf32>,
    } else {
    }
    %c0 = arith.constant 0 : index
    %c0_1 = arith.constant 0 : index
    %3 = vector.load %arg3[%c0, %c0_1] : memref<8x1xi32, #tpu.memory_space<vmem>>, vector<8x1xi32>
    %c0_2 = arith.constant 0 : index
    %c0_3 = arith.constant 0 : index
    %c0_4 = arith.constant 0 : index
    %4 = vector.load %arg2[%c0_2, %c0_3, %c0_4] : memref<4x8x1xf32, #tpu.memory_space<vmem>>, vector<1x8x1xf32>
    %5 = vector.shape_cast %4 : vector<1x8x1xf32> to vector<8x1xf32>
    %c1 = arith.constant 1 : index
    %c0_5 = arith.constant 0 : index
    %c0_6 = arith.constant 0 : index
    %6 = vector.load %arg2[%c1, %c0_5, %c0_6] : memref<4x8x1xf32, #tpu.memory_space<vmem>>, vector<1x8x1xf32>
    %7 = vector.shape_cast %6 : vector<1x8x1xf32> to vector<8x1xf32>
    %c2 = arith.constant 2 : index
    %c0_7 = arith.constant 0 : index
    %c0_8 = arith.constant 0 : index
    %8 = vector.load %arg2[%c2, %c0_7, %c0_8] : memref<4x8x1xf32, #tpu.memory_space<vmem>>, vector<1x8x1xf32>
    %9 = vector.shape_cast %8 : vector<1x8x1xf32> to vector<8x1xf32>
    %c3 = arith.constant 3 : index
    %c0_9 = arith.constant 0 : index
    %c0_10 = arith.constant 0 : index
    %10 = vector.load %arg2[%c3, %c0_9, %c0_10] : memref<4x8x1xf32, #tpu.memory_space<vmem>>, vector<1x8x1xf32>
    %11 = vector.shape_cast %10 : vector<1x8x1xf32> to vector<8x1xf32>
    %12 = arith.maximumf %5, %7 : vector<8x1xf32>
    %13 = arith.subf %5, %7 : vector<8x1xf32>
    %14 = math.absf %13 : vector<8x1xf32>
    %cst = arith.constant 0.000000e+00 : f32
    %15 = vector.broadcast %cst : f32 to vector<8x1xf32>
    %16 = arith.subf %15, %14 : vector<8x1xf32>
    %17 = math.exp %16 : vector<8x1xf32>
    %cst_11 = arith.constant 1.000000e+00 : f32
    %18 = vector.broadcast %cst_11 : f32 to vector<8x1xf32>
    %19 = arith.addf %18, %17 : vector<8x1xf32>
    %20 = math.log %19 : vector<8x1xf32>
    %21 = arith.addf %12, %20 : vector<8x1xf32>
    %c1_i32 = arith.constant 1 : i32
    %22 = vector.broadcast %c1_i32 : i32 to vector<8x1xi32>
    %23 = arith.cmpi eq, %3, %22 : vector<8x1xi32>
    %24 = arith.select %23, %7, %5 : vector<8x1xi1>, vector<8x1xf32>
    %25 = arith.subf %21, %24 : vector<8x1xf32>
    %26 = arith.maximumf %9, %11 : vector<8x1xf32>
    %27 = arith.subf %9, %11 : vector<8x1xf32>
    %28 = math.absf %27 : vector<8x1xf32>
    %cst_12 = arith.constant 0.000000e+00 : f32
    %29 = vector.broadcast %cst_12 : f32 to vector<8x1xf32>
    %30 = arith.subf %29, %28 : vector<8x1xf32>
    %31 = math.exp %30 : vector<8x1xf32>
    %cst_13 = arith.constant 1.000000e+00 : f32
    %32 = vector.broadcast %cst_13 : f32 to vector<8x1xf32>
    %33 = arith.addf %32, %31 : vector<8x1xf32>
    %34 = math.log %33 : vector<8x1xf32>
    %35 = arith.addf %26, %34 : vector<8x1xf32>
    %c3_i32 = arith.constant 3 : i32
    %36 = vector.broadcast %c3_i32 : i32 to vector<8x1xi32>
    %37 = arith.cmpi eq, %3, %36 : vector<8x1xi32>
    %38 = arith.select %37, %11, %9 : vector<8x1xi1>, vector<8x1xf32>
    %39 = arith.subf %35, %38 : vector<8x1xf32>
    %c2_i32 = arith.constant 2 : i32
    %40 = vector.broadcast %c2_i32 : i32 to vector<8x1xi32>
    %41 = arith.cmpi sge, %3, %40 : vector<8x1xi32>
    %42 = arith.select %41, %39, %25 : vector<8x1xi1>, vector<8x1xf32>
    %c0_i32_14 = arith.constant 0 : i32
    %43 = arith.cmpi eq, %arg1, %c0_i32_14 : i32
    %44 = arith.extui %43 : i1 to i32
    %c0_i32_15 = arith.constant 0 : i32
    %45 = arith.cmpi ne, %44, %c0_i32_15 : i32
    scf.if %45 {
      %c0_20 = arith.constant 0 : index
      %c0_21 = arith.constant 0 : index
      %52 = vector.load %arg5[%c0_20, %c0_21] : memref<8x1xf32, #tpu.memory_space<vmem>>, vector<8x1xf32>
      %53 = tpu.iota {dimensions = array<i32: 0>} : vector<8x1xi32>
      %c1_i32_22 = arith.constant 1 : i32
      %54 = arith.muli %arg1, %c1_i32_22 : i32
      %55 = tpu.iota {dimensions = array<i32: 1>} : vector<8x1xi32>
      %56 = vector.broadcast %54 : i32 to vector<8x1xi32>
      %57 = arith.addi %56, %55 : vector<8x1xi32>
      %c8_i32 = arith.constant 8 : i32
      %58 = arith.muli %arg0, %c8_i32 : i32
      %59 = vector.broadcast %58 : i32 to vector<8x1xi32>
      %60 = arith.addi %59, %53 : vector<8x1xi32>
      %c1_i32_23 = arith.constant 1 : i32
      %61 = vector.broadcast %c1_i32_23 : i32 to vector<8x1xi32>
      %62 = arith.muli %60, %61 : vector<8x1xi32>
      %63 = arith.addi %62, %57 : vector<8x1xi32>
      %c1_i32_24 = arith.constant 1 : i32
      %64 = vector.broadcast %c1_i32_24 : i32 to vector<8x1xi32>
      %65 = arith.cmpi slt, %57, %64 : vector<8x1xi32>
      %c8_i32_25 = arith.constant 8 : i32
      %66 = vector.broadcast %c8_i32_25 : i32 to vector<8x1xi32>
      %67 = arith.cmpi slt, %63, %66 : vector<8x1xi32>
      %68 = arith.andi %65, %67 : vector<8x1xi1>
      %cst_26 = arith.constant 0.000000e+00 : f32
      %69 = vector.broadcast %cst_26 : f32 to vector<8x1xf32>
      %70 = arith.select %68, %42, %69 : vector<8x1xi1>, vector<8x1xf32>
      %71 = arith.addf %52, %70 : vector<8x1xf32>
      %c0_27 = arith.constant 0 : index
      %c0_28 = arith.constant 0 : index
      %72 = vector.load %arg5[%c0_27, %c0_28] : memref<8x1xf32, #tpu.memory_space<vmem>>, vector<8x1xf32>
      tpu.vector_store %arg5[%c0_27, %c0_28], %71 {strides = array<i32>} : memref<8x1xf32, #tpu.memory_space<vmem>>, vector<8x1xf32>,
    } else {
    }
    %c0_i32_16 = arith.constant 0 : i32
    %46 = arith.cmpi ne, %arg1, %c0_i32_16 : i32
    %47 = arith.extui %46 : i1 to i32
    %c0_i32_17 = arith.constant 0 : i32
    %48 = arith.cmpi ne, %47, %c0_i32_17 : i32
    scf.if %48 {
      %c0_20 = arith.constant 0 : index
      %c0_21 = arith.constant 0 : index
      %52 = vector.load %arg5[%c0_20, %c0_21] : memref<8x1xf32, #tpu.memory_space<vmem>>, vector<8x1xf32>
      %53 = arith.addf %52, %42 : vector<8x1xf32>
      %c0_22 = arith.constant 0 : index
      %c0_23 = arith.constant 0 : index
      %54 = vector.load %arg5[%c0_22, %c0_23] : memref<8x1xf32, #tpu.memory_space<vmem>>, vector<8x1xf32>
      tpu.vector_store %arg5[%c0_22, %c0_23], %53 {strides = array<i32>} : memref<8x1xf32, #tpu.memory_space<vmem>>, vector<8x1xf32>,
    } else {
    }
    %c0_i32_18 = arith.constant 0 : i32
    %49 = arith.cmpi eq, %arg1, %c0_i32_18 : i32
    %50 = arith.extui %49 : i1 to i32
    %c0_i32_19 = arith.constant 0 : i32
    %51 = arith.cmpi ne, %50, %c0_i32_19 : i32
    scf.if %51 {
      %c0_20 = arith.constant 0 : index
      %c0_21 = arith.constant 0 : index
      %52 = vector.load %arg5[%c0_20, %c0_21] : memref<8x1xf32, #tpu.memory_space<vmem>>, vector<8x1xf32>
      %53 = vector.shape_cast %52 : vector<8x1xf32> to vector<1x8x1xf32>
      %cst_22 = arith.constant dense<0.000000e+00> : vector<1xf32>
      %54 = vector.multi_reduction <add>, %53, %cst_22 [1, 2] : vector<1x8x1xf32> to vector<1xf32>
      %55 = vector.shape_cast %54 : vector<1xf32> to vector<1x1x1xf32>
      %56 = vector.extract %55[0, 0, 0] : f32 from vector<1x1x1xf32>
      %57 = vector.broadcast %56 : f32 to vector<1x8x128xf32>
      %c0_23 = arith.constant 0 : index
      %c0_24 = arith.constant 0 : index
      %c0_25 = arith.constant 0 : index
      %58 = vector.load %arg4[%c0_23, %c0_24, %c0_25] : memref<1x8x128xf32, #tpu.memory_space<vmem>>, vector<1x8x128xf32>
      tpu.vector_store %arg4[%c0_23, %c0_24, %c0_25], %57 {strides = array<i32>} : memref<1x8x128xf32, #tpu.memory_space<vmem>>, vector<1x8x128xf32>,
    } else {
    }
    return
  }
  func.func @transform_0(%arg0: i32, %arg1: i32) -> (i32, i32, i32) {
    %c0_i32 = arith.constant 0 : i32
    %c0_i32_0 = arith.constant 0 : i32
    return %c0_i32, %arg0, %arg1 : i32, i32, i32
  }
  func.func @transform_1(%arg0: i32, %arg1: i32) -> (i32, i32) {
    %c0_i32 = arith.constant 0 : i32
    return %arg0, %arg1 : i32, i32
  }
  func.func @transform_2(%arg0: i32, %arg1: i32) -> (i32, i32, i32) {
    %c0_i32 = arith.constant 0 : i32
    %c0_i32_0 = arith.constant 0 : i32
    %c0_i32_1 = arith.constant 0 : i32
    return %arg0, %c0_i32, %c0_i32_0 : i32, i32, i32
  }
}

</mosaic_0001>

<llo_original>
// kernel: tpu_custom_call.1
$region0: #{tpu_custom_call.1}
  #allocation0 [shape = 'u32[]', space=smem, size = 0x4, offset = 0x4, fixed_abs, tag = 'smem constant byte address 0x4 - core index']
  #allocation1 [shape = 'u32[144,128]{1,0:T(1,128)}', space=vmem, size = 0x12000, scoped, tag = 'internal scratch']
  #allocation2 [shape = 'f32[8,1]{1,0:T(8,128)}', space=vmem, size = 0x1000, scoped, tag = 'scratch operand']
  %s0 = inlined_call_operand.vmem [shape: f32[4,16,1], index: 0, kind: input, shape index: {}]
  %s1 = inlined_call_operand.vmem [shape: s32[16,1], index: 1, kind: input, shape index: {}]
  %s2 = inlined_call_operand.hbm [shape: f32[2,8,128], index: 2, kind: output, shape index: {}]
  %s3 = sld [smem:[#allocation0]]
  $region95: #{tpu_custom_call.1} parent=0
    _
  %s5 = ssub.s32 1, %s3
  %s6 = scalar_select 0, %s5, %s3
  $region1: #{tpu_custom_call.1} parent=0
    #allocation3 [shape = 'u8[32768]{0}', space=vmem, size = 0x8000, scoped, tag = 'input window, operand 0']
    #allocation4 [shape = 'u8[8192]{0}', space=vmem, size = 0x2000, scoped, tag = 'output window, operand 0']
    #allocation5 [shape = 's32[2]{0}', space=sflag, size = 0x8, scoped, tag = 'scoped memory for tpu_custom_call.1']
    %7 = vsyncpa [#allocation5], 0
    %s8 = scalar_lea.sflag [#allocation5], 1
    %9 = vsyncpa %s8, 0
    loop: start=0, step=1, limit=4
    $region2: #{tpu_custom_call.1} parent=1 // loop_pre_header
      _
    $region3: #{tpu_custom_call.1} parent=1 // loop_header
      %s11 = sphi 0, %s15
      %p12 = scmp.ge.s32.totalorder %s11, 4
      %s18 = sphi 0, %s30
      %s19 = sphi 0, %s26
      %s20 = sphi 0, %s18
      %s21 = sphi 0, %s19
      %s22 = sphi 0, %s20
      %s23 = sphi 0, %s21
      %s35 = sphi 0, %s37
      %s38 = sphi 0, %s35
      %s39 = sphi 0, %s38
      %s55 = sphi 0, %s39
      %s63 = sphi 0, %s65
      %s66 = sphi 0, %s63
      %s67 = sphi 0, %s66
      %s83 = sphi 0, %s67
      %s89 = sphi 0, %s91
      %s92 = sphi 0, %s89
      %s93 = sphi 0, %s92
      %s109 = sphi 0, %s93
    $region4: #{tpu_custom_call.1} parent=1 // loop_header_branch
      %14 = sbr.rel (%p12) target = $region8
    $region5: #{tpu_custom_call.1} parent=1 // loop_body
      %s16 = ssub.s32 %s11, 1
      %s17 = ssub.s32 %s11, 2
      %s24 = sadd.s32 1, %s19
      %p25 = scmp.ge.s32.totalorder %s24, 1
      %s26 = scalar_select %p25, 0, %s24
      %s27 = sadd.s32 1, %s18
      %s28 = scalar_select %p25, %s27, %s18
      %p29 = scmp.ge.s32.totalorder %s28, 2
      %s30 = scalar_select %p29, 0, %s28
      %s31 = ssub.s32 %s18, %s30
      %s32 = ssub.s32 %s19, %s26
      %s33 = sor.u32 %s31, %s32
      %p34 = scmp.eq.s32.totalorder %s33, 0
      %s36 = sadd.s32 %s35, 1
      %s37 = scalar_select %p34, %s35, %s36
      %p40 = pneg %p34
      %p41 = scmp.eq.s32.totalorder %s11, 1
      %p42 = por %p40, %p41
      %p43 = scmp.ne.s32.totalorder %s35, %s38
      %p44 = scmp.eq.s32.totalorder %s11, 0
      %p45 = por %p43, %p44
      %p46 = scmp.ne.s32.totalorder %s35, %s38
      %p47 = scmp.eq.s32.totalorder %s16, 1
      %p48 = por %p46, %p47
      %p49 = scmp.ne.s32.totalorder %s38, %s39
      %p50 = scmp.eq.s32.totalorder %s16, 0
      %p51 = por %p49, %p50
      %p52 = scmp.ne.s32.totalorder %s38, %s39
      %p53 = scmp.eq.s32.totalorder %s17, 1
      %p54 = por %p52, %p53
      %p56 = scmp.ne.s32.totalorder %s39, %s55
      %p57 = scmp.eq.s32.totalorder %s17, 0
      %p58 = por %p56, %p57
      %s59 = ssub.s32 %s18, %s30
      %s60 = ssub.s32 %s19, %s26
      %s61 = sor.u32 %s59, %s60
      %p62 = scmp.eq.s32.totalorder %s61, 0
      %s64 = sadd.s32 %s63, 1
      %s65 = scalar_select %p62, %s63, %s64
      %p68 = pneg %p62
      %p69 = scmp.eq.s32.totalorder %s11, 1
      %p70 = por %p68, %p69
      %p71 = scmp.ne.s32.totalorder %s63, %s66
      %p72 = scmp.eq.s32.totalorder %s11, 0
      %p73 = por %p71, %p72
      %p74 = scmp.ne.s32.totalorder %s63, %s66
      %p75 = scmp.eq.s32.totalorder %s16, 1
      %p76 = por %p74, %p75
      %p77 = scmp.ne.s32.totalorder %s66, %s67
      %p78 = scmp.eq.s32.totalorder %s16, 0
      %p79 = por %p77, %p78
      %p80 = scmp.ne.s32.totalorder %s66, %s67
      %p81 = scmp.eq.s32.totalorder %s17, 1
      %p82 = por %p80, %p81
      %p84 = scmp.ne.s32.totalorder %s67, %s83
      %p85 = scmp.eq.s32.totalorder %s17, 0
      %p86 = por %p84, %p85
      %s87 = ssub.s32 %s18, %s30
      %p88 = scmp.eq.s32.totalorder %s87, 0
      %s90 = sadd.s32 %s89, 1
      %s91 = scalar_select %p88, %s89, %s90
      %p94 = pneg %p88
      %p95 = scmp.eq.s32.totalorder %s11, 1
      %p96 = por %p94, %p95
      %p97 = scmp.ne.s32.totalorder %s89, %s92
      %p98 = scmp.eq.s32.totalorder %s11, 0
      %p99 = por %p97, %p98
      %p100 = scmp.ne.s32.totalorder %s89, %s92
      %p101 = scmp.eq.s32.totalorder %s16, 1
      %p102 = por %p100, %p101
      %p103 = scmp.ne.s32.totalorder %s92, %s93
      %p104 = scmp.eq.s32.totalorder %s16, 0
      %p105 = por %p103, %p104
      %p106 = scmp.ne.s32.totalorder %s92, %s93
      %p107 = scmp.eq.s32.totalorder %s17, 1
      %p108 = por %p106, %p107
      %p110 = scmp.ne.s32.totalorder %s93, %s109
      %p111 = scmp.eq.s32.totalorder %s17, 0
      %p112 = por %p110, %p111
      %p113 = scmp.le.s32.totalorder 1, %s11
      %p114 = scmp.lt.s32.totalorder %s11, 3
      %p115 = pnand %p113, %p114
      %p116 = pneg %p115
      // Predicated region
      $region9: #{tpu_custom_call.1} parent=5 // pred_check
        _
      $region10: #{tpu_custom_call.1} parent=5 // pred_check_branch
        %118 = sbr.rel (%p115) target = $region12
      $region11: #{tpu_custom_call.1} parent=5 // pred_region
        %s119 = ssub.s32 %s11, 1
      $region12: #{tpu_custom_call.1} parent=5 // pred_fallthru
        _
      %p120 = scmp.lt.s32.totalorder %s11, 2
      // Predicated region
      $region13: #{tpu_custom_call.1} parent=5 // pred_check
        %p121 = pneg %p120
      $region14: #{tpu_custom_call.1} parent=5 // pred_check_branch
        %123 = sbr.rel (%p121) target = $region16
      $region15: #{tpu_custom_call.1} parent=5 // pred_region
        // Predicated region
        $region17: #{tpu_custom_call.1} parent=15 // pred_check
          %p124 = pneg %p45
        $region18: #{tpu_custom_call.1} parent=15 // pred_check_branch
          %126 = sbr.rel (%p124) target = $region20
        $region19: #{tpu_custom_call.1} parent=15 // pred_region
          %s127 = sand.u32 %s35, 1
          %s128 = sand.u32 %s35, 1
          %s129 = smul.addr %s128, 32
          %s130 = scalar_lea.vmem [#allocation3], %s129
          %s131 = sadd.s32 %s19, %s18
          %s132 = smul.addr %s131, 8
          %s133 = scalar_lea.vmem %s0, %s132
          // Predicated region
          $region21: #{tpu_custom_call.1} parent=19 // pred_check
            _
          $region22: #{tpu_custom_call.1} parent=19 // pred_check_branch
            %135 = sbr.rel (0) target = $region24
          $region23: #{tpu_custom_call.1} parent=19 // pred_region
            // Predicated region
            $region25: #{tpu_custom_call.1} parent=23 // pred_check
              _
            $region26: #{tpu_custom_call.1} parent=23 // pred_check_branch
              %137 = sbr.rel (0) target = $region28
            $region27: #{tpu_custom_call.1} parent=23 // pred_region
              // Predicated region
              $region40: #{tpu_custom_call.1} parent=27 // pred_check
                _
              $region41: #{tpu_custom_call.1} parent=27 // pred_check_branch
                %158 = sbr.rel (0) target = $region43
              $region42: #{tpu_custom_call.1} parent=27 // pred_region
                loop: start=0, step=1, limit=1
                $region44: #{tpu_custom_call.1} parent=42 // loop_pre_header
                  _
                $region45: #{tpu_custom_call.1} parent=42 // loop_header
                  %s160 = sphi 0, %s164
                  %p161 = scmp.ge.s32.totalorder %s160, 1
                  %s165 = sphi %s133, %s133
                  %s166 = sphi %s130, %s130
                $region46: #{tpu_custom_call.1} parent=42 // loop_header_branch
                  %163 = sbr.rel (%p161) target = $region50
                $region47: #{tpu_custom_call.1} parent=42 // loop_body
                  %v167 = vld [vmem:[%s165] sm:$0xff]
                  %168 = vst [vmem:[%s166] sm:$0xff] %v167
                  %v169 = vld [vmem:[%s165 + $0x10] sm:$0xff]
                  %170 = vst [vmem:[%s166 + $0x8] sm:$0xff] %v169
                  %v171 = vld [vmem:[%s165 + $0x20] sm:$0xff]
                  %172 = vst [vmem:[%s166 + $0x10] sm:$0xff] %v171
                  %v173 = vld [vmem:[%s165 + $0x30] sm:$0xff]
                  %174 = vst [vmem:[%s166 + $0x18] sm:$0xff] %v173
                $region48: #{tpu_custom_call.1} parent=42 // loop_footer
                  %s164 = sadd.s32 1, %s160
                $region49: #{tpu_custom_call.1} parent=42 // loop_footer_branch
                  %159 = sbr.rel target = $region45
                $region50: #{tpu_custom_call.1} parent=42 // loop_exit
                  _
              $region43: #{tpu_custom_call.1} parent=27 // pred_fallthru
                _
              // Predicated region
              $region51: #{tpu_custom_call.1} parent=27 // pred_check
                _
              $region52: #{tpu_custom_call.1} parent=27 // pred_check_branch
                %176 = sbr.rel target = $region54
              $region53: #{tpu_custom_call.1} parent=27 // pred_region
                _
              $region54: #{tpu_custom_call.1} parent=27 // pred_fallthru
                _
            $region28: #{tpu_custom_call.1} parent=23 // pred_fallthru
              _
            // Predicated region
            $region29: #{tpu_custom_call.1} parent=23 // pred_check
              _
            $region30: #{tpu_custom_call.1} parent=23 // pred_check_branch
              %139 = sbr.rel target = $region32
            $region31: #{tpu_custom_call.1} parent=23 // pred_region
              loop: start=0, step=1, limit=1
              $region33: #{tpu_custom_call.1} parent=31 // loop_pre_header
                _
              $region34: #{tpu_custom_call.1} parent=31 // loop_header
                %s142 = sphi 0, %s146
                %p143 = scmp.ge.s32.totalorder %s142, 1
                %s147 = sphi %s133, %s133
                %s148 = sphi %s130, %s130
              $region35: #{tpu_custom_call.1} parent=31 // loop_header_branch
                %145 = sbr.rel (%p143) target = $region39
              $region36: #{tpu_custom_call.1} parent=31 // loop_body
                %v149 = vld [vmem:[%s147] sm:$0xff]
                %150 = vst [vmem:[%s148] sm:$0xff] %v149
                %v151 = vld [vmem:[%s147 + $0x10] sm:$0xff]
                %152 = vst [vmem:[%s148 + $0x8] sm:$0xff] %v151
                %v153 = vld [vmem:[%s147 + $0x20] sm:$0xff]
                %154 = vst [vmem:[%s148 + $0x10] sm:$0xff] %v153
                %v155 = vld [vmem:[%s147 + $0x30] sm:$0xff]
                %156 = vst [vmem:[%s148 + $0x18] sm:$0xff] %v155
              $region37: #{tpu_custom_call.1} parent=31 // loop_footer
                %s146 = sadd.s32 1, %s142
              $region38: #{tpu_custom_call.1} parent=31 // loop_footer_branch
                %141 = sbr.rel target = $region34
              $region39: #{tpu_custom_call.1} parent=31 // loop_exit
                _
            $region32: #{tpu_custom_call.1} parent=23 // pred_fallthru
              _
          $region24: #{tpu_custom_call.1} parent=19 // pred_fallthru
            _
          %177 = vnop
        $region20: #{tpu_custom_call.1} parent=15 // pred_fallthru
          _
        // Predicated region
        $region55: #{tpu_custom_call.1} parent=15 // pred_check
          %p178 = pneg %p73
        $region56: #{tpu_custom_call.1} parent=15 // pred_check_branch
          %180 = sbr.rel (%p178) target = $region58
        $region57: #{tpu_custom_call.1} parent=15 // pred_region
          %p181 = scmp.lt.s32.totalorder %s18, 1
          %s182 = scalar_select %p181, %s18, 1
          %p183 = scmp.lt.s32.totalorder %s19, 0
          %s184 = scalar_select %p183, %s19, 0
          %s185 = sadd.s32 %s184, %s182
          %s186 = smul.addr %s185, 8
          %s187 = scalar_lea.vmem %s1, %s186
        $region58: #{tpu_custom_call.1} parent=15 // pred_fallthru
          _
      $region16: #{tpu_custom_call.1} parent=5 // pred_fallthru
        _
      %p188 = scmp.le.s32.totalorder 1, %s11
      %p189 = scmp.lt.s32.totalorder %s11, 3
      %p190 = pnand %p188, %p189
      %p191 = pneg %p190
      // Predicated region
      $region59: #{tpu_custom_call.1} parent=5 // pred_check
        _
      $region60: #{tpu_custom_call.1} parent=5 // pred_check_branch
        %193 = sbr.rel (%p190) target = $region62
      $region61: #{tpu_custom_call.1} parent=5 // pred_region
        %s194 = ssub.s32 %s11, 1
        %s195 = sand.u32 %s38, 1
        %s196 = sand.u32 %s38, 1
        %s197 = smul.addr %s196, 32
        %s198 = scalar_lea.vmem [#allocation3], %s197
        // Predicated region
        $region63: #{tpu_custom_call.1} parent=61 // pred_check
          %p199 = pneg %p51
        $region64: #{tpu_custom_call.1} parent=61 // pred_check_branch
          %201 = sbr.rel (%p199) target = $region66
        $region65: #{tpu_custom_call.1} parent=61 // pred_region
          _
        $region66: #{tpu_custom_call.1} parent=61 // pred_fallthru
          _
        %s202 = sand.u32 %s38, 1
        %s203 = sand.u32 %s38, 1
        %s204 = smul.addr %s203, 32
        %s205 = scalar_lea.vmem [#allocation3], %s204
        %p206 = pneg %p51
        %p207 = pneg %p48
        %p208 = scmp.lt.s32.totalorder %s20, 1
        %s209 = scalar_select %p208, %s20, 1
        %p210 = scmp.lt.s32.totalorder %s21, 0
        %s211 = scalar_select %p210, %s21, 0
        %s212 = sadd.s32 %s211, %s209
        %s213 = smul.addr %s212, 8
        %s214 = scalar_lea.vmem %s1, %s213
        %p215 = pneg %p79
        %p216 = pneg %p76
        %p217 = pneg %p105
        %p218 = pneg %p102
        %s219 = sand.u32 %s92, 1
        %s220 = scalar_lea.sflag [#allocation5], %s219
        %s221 = sand.u32 %s92, 1
        %s222 = smul.addr %s221, 8
        %s223 = scalar_lea.vmem [#allocation4], %s222
        %p224 = scmp.lt.s32.totalorder %s20, 1
        %s225 = scalar_select %p224, %s20, 1
        %p226 = scmp.lt.s32.totalorder %s21, 0
        %s227 = scalar_select %p226, %s21, 0
        %s228 = sadd.s32 %s227, %s225
        %s229 = smul.addr %s228, 8
        %s230 = scalar_lea.vmem %s1, %s229
        %p231 = scmp.eq.s32.totalorder %s21, 0
        // Predicated region
        $region67: #{tpu_custom_call.1} parent=61 // pred_check
          %p232 = pneg %p231
        $region68: #{tpu_custom_call.1} parent=61 // pred_check_branch
          %234 = sbr.rel (%p232) target = $region70
        $region69: #{tpu_custom_call.1} parent=61 // pred_region
          %vm235 = vcmask 7168
          %236 = vst.msk [vmem:[#allocation2] sm:$0xff] %vm235, 0.0
        $region70: #{tpu_custom_call.1} parent=61 // pred_fallthru
          _
        %v237 = vld [vmem:[%s230] sm:$0xff]
        %v238 = vld [vmem:[%s198] sm:$0xff]
        %s239 = scalar_lea.vmem %s198, 8 [#allocation3]
        %v240 = vld [vmem:[%s239] sm:$0xff]
        %s241 = scalar_lea.vmem %s198, 16 [#allocation3]
        %v242 = vld [vmem:[%s241] sm:$0xff]
        %s243 = scalar_lea.vmem %s198, 24 [#allocation3]
        %v244 = vld [vmem:[%s243] sm:$0xff]
        %v245 = vmax.f32 %v238, %v240
        %v246 = vsub.f32 %v238, %v240
        %v247 = vand.u32 2147483647, %v246
        %v248 = vsub.f32 0.0, %v247
        %v249 = vmul.f32 %v248, 1.442695
        %v250 = vpow.pop %v249
        %v251 = vadd.f32 %v250, 1.0
        %v252 = vlog2.pop %v251
        %v253 = vmul.f32 %v252, 0.6931472
        %v254 = vadd.f32 %v245, %v253
        %vm255 = vcmp.eq.s32.totalorder %v237, 1
        %v256 = vsel %vm255, %v240, %v238
        %v257 = vsub.f32 %v254, %v256
        %v258 = vmax.f32 %v242, %v244
        %v259 = vsub.f32 %v242, %v244
        %v260 = vand.u32 2147483647, %v259
        %v261 = vsub.f32 0.0, %v260
        %v262 = vmul.f32 %v261, 1.442695
        %v263 = vpow.pop %v262
        %v264 = vadd.f32 %v263, 1.0
        %v265 = vlog2.pop %v264
        %v266 = vmul.f32 %v265, 0.6931472
        %v267 = vadd.f32 %v258, %v266
        %vm268 = vcmp.eq.s32.totalorder %v237, 3
        %v269 = vsel %vm268, %v244, %v242
        %v270 = vsub.f32 %v267, %v269
        %vm271 = vcmp.ge.s32.totalorder %v237, 2
        %v272 = vsel %vm271, %v270, %v257
        // Predicated region
        $region71: #{tpu_custom_call.1} parent=61 // pred_check
          %p273 = pneg %p231
        $region72: #{tpu_custom_call.1} parent=61 // pred_check_branch
          %275 = sbr.rel (%p273) target = $region74
        $region73: #{tpu_custom_call.1} parent=61 // pred_region
          %v276 = vld [vmem:[#allocation2] sm:$0xff]
          %v277 = vlaneseq
          %v278 = vshrl.u32 %v277, 7
          %v279 = vlaneseq
          %v280 = vand.u32 %v279, 127
          %v281 = vstv %s21
          %v282 = vadd.s32 %v281, %v280
          %s283 = smul.u32 %s20, 8
          %v284 = vstv %s283
          %v285 = vadd.s32 %v284, %v278
          %v286 = vadd.s32 %v285, %v282
          %vm287 = vcmp.lt.s32.totalorder %v282, 1
          %vm288 = vcmp.lt.s32.totalorder %v286, 8
          %vm289 = vmand %vm287, %vm288
          %v290 = vsel %vm289, %v272, 0.0
          %v291 = vadd.f32 %v276, %v290
          %vm292 = vcmask 7168
          %293 = vst.msk [vmem:[#allocation2] sm:$0xff] %vm292, %v291
        $region74: #{tpu_custom_call.1} parent=61 // pred_fallthru
          _
        %p294 = scmp.ne.s32.totalorder %s21, 0
        // Predicated region
        $region75: #{tpu_custom_call.1} parent=61 // pred_check
          %p295 = pneg %p294
        $region76: #{tpu_custom_call.1} parent=61 // pred_check_branch
          %297 = sbr.rel (%p295) target = $region78
        $region77: #{tpu_custom_call.1} parent=61 // pred_region
          %v298 = vld [vmem:[#allocation2] sm:$0xff]
          %v299 = vadd.f32 %v298, %v272
          %vm300 = vcmask 7168
          %301 = vst.msk [vmem:[#allocation2] sm:$0xff] %vm300, %v299
        $region78: #{tpu_custom_call.1} parent=61 // pred_fallthru
          _
        // Predicated region
        $region79: #{tpu_custom_call.1} parent=61 // pred_check
          %p302 = pneg %p231
        $region80: #{tpu_custom_call.1} parent=61 // pred_check_branch
          %304 = sbr.rel (%p302) target = $region82
        $region81: #{tpu_custom_call.1} parent=61 // pred_region
          %v305 = vld [vmem:[#allocation2] sm:$0xff]
          %vm306 = vcmask 7168
          %v307 = vsel %vm306, %v305, 0.0
          %308 = vadd.xlane.f32.xlu0 %v307
          %v309 = vpop.xlane.xlu0 %308
          %v310 = vrot.slane %v309, 4
          %v311 = vadd.f32 %v309, %v310
          %v312 = vrot.slane %v311, 2
          %v313 = vadd.f32 %v311, %v312
          %v314 = vrot.slane %v313, 1
          %v315 = vadd.f32 %v313, %v314
          %s316 = vtos %v315
          %v317 = vstv %s316
          %318 = vst [vmem:[%s223] sm:$0xff] %v317
        $region82: #{tpu_custom_call.1} parent=61 // pred_fallthru
          _
        %s319 = sand.u32 %s92, 1
        %s320 = scalar_lea.sflag [#allocation5], %s319
        %s321 = sand.u32 %s92, 1
        %s322 = smul.addr %s321, 8
        %s323 = scalar_lea.vmem [#allocation4], %s322
        // Predicated region
        $region83: #{tpu_custom_call.1} parent=61 // pred_check
          %p324 = pneg %p102
        $region84: #{tpu_custom_call.1} parent=61 // pred_check_branch
          %326 = sbr.rel (%p324) target = $region86
        $region85: #{tpu_custom_call.1} parent=61 // pred_region
          %s328 = ssub.s32 128, 128
          %329 = vsyncadd %s320, %s328
          %s330 = smul.addr %s20, 128
          %s331 = scalar_lea.hbm %s2, %s330
          %s333 = sshll.u32 %s323, 4
          %s334 = int_to_ptr.vmem [resolvable:$true] %s333
          %336 = dma.vmem_to_hbm [thread:$0]  %s334, 128, %s331, %s320
        $region86: #{tpu_custom_call.1} parent=61 // pred_fallthru
          _
      $region62: #{tpu_custom_call.1} parent=5 // pred_fallthru
        _
      %p337 = scmp.le.s32.totalorder 2, %s11
      // Predicated region
      $region87: #{tpu_custom_call.1} parent=5 // pred_check
        %p338 = pneg %p337
      $region88: #{tpu_custom_call.1} parent=5 // pred_check_branch
        %340 = sbr.rel (%p338) target = $region90
      $region89: #{tpu_custom_call.1} parent=5 // pred_region
        %s341 = ssub.s32 %s11, 2
        // Predicated region
        $region91: #{tpu_custom_call.1} parent=89 // pred_check
          %p342 = pneg %p108
        $region92: #{tpu_custom_call.1} parent=89 // pred_check_branch
          %344 = sbr.rel (%p342) target = $region94
        $region93: #{tpu_custom_call.1} parent=89 // pred_region
          %s345 = sand.u32 %s93, 1
          %s346 = scalar_lea.sflag [#allocation5], %s345
          %s347 = sand.u32 %s93, 1
          %s348 = smul.addr %s347, 8
          %s349 = scalar_lea.vmem [#allocation4], %s348
          %350 = dma.done %s346, 128
        $region94: #{tpu_custom_call.1} parent=89 // pred_fallthru
          _
      $region90: #{tpu_custom_call.1} parent=5 // pred_fallthru
        _
    $region6: #{tpu_custom_call.1} parent=1 // loop_footer
      %s15 = sadd.s32 1, %s11
    $region7: #{tpu_custom_call.1} parent=1 // loop_footer_branch
      %10 = sbr.rel target = $region3
    $region8: #{tpu_custom_call.1} parent=1 // loop_exit
      _
    %351 = vsyncpa [#allocation5], 1
    %s352 = scalar_lea.sflag [#allocation5], 1
    %353 = vsyncpa %s352, 1

</llo_original>
